<compile_context>
chip_gen: v6e
topology: v6e:2x2x1
jax: 0.10.0
libtpu: 0.0.40
codegen_flags: <defaults>
</compile_context>

<pallas_src>
import jax
import jax.numpy as jnp
from jax.experimental import pallas as pl
from jax.experimental.pallas import tpu as pltpu


# ---------------------------------------------------------------------------
# Kernels
# ---------------------------------------------------------------------------
def _denoise_kernel(x_ref, w_ref, b_ref, o_ref):
    """pre = W @ x + b on one (C, TILE_S) spatial block (spatial axis lane-dense)."""
    pre = jnp.dot(w_ref[...], x_ref[...], preferred_element_type=jnp.float32)
    o_ref[...] = (pre + b_ref[...]).astype(o_ref.dtype)


def _denoise_loss_kernel(x_ref, w_ref, b_ref, t_ref, o_ref, part_ref):
    """pre = W @ x + b ; emit this grid point's sum((pre - target)^2) as its own partial."""
    pre = jnp.dot(w_ref[...], x_ref[...], preferred_element_type=jnp.float32)
    pre = pre + b_ref[...]
    o_ref[...] = pre.astype(o_ref.dtype)

    diff = pre - t_ref[...].astype(jnp.float32)
    # Per-grid-point partial (no cross-grid accumulator -> both axes stay "parallel").
    part_ref[...] = jnp.full((8, 128), jnp.sum(diff * diff), dtype=jnp.float32)


# ---------------------------------------------------------------------------
# VMEM budget / tile selection
# ---------------------------------------------------------------------------
def _vmem_limit_bytes() -> int:
    """Per-generation VMEM limit to request: 3/4 of physical, capped at 96 MiB."""
    try:
        cap = pltpu.get_tpu_info().vmem_capacity_bytes
    except Exception:
        cap = 64 * 1024 * 1024          # conservative fallback = v7x physical VMEM per core
    return int(min(cap * 3 // 4, 96 * 1024 * 1024))


def _pick_spatial_tile(hw: int, c: int, *, dtype_bytes: int, n_streams: int,
                       vmem_budget: int, n_batch: int) -> int:
    """Largest multiple-of-128 spatial tile that divides hw and keeps the
    double-buffered streaming working set within vmem_budget, while keeping
    enough grid steps for pipelining / v7x megacore load balance."""
    assert hw % 128 == 0
    per_col = 2 * n_streams * c * dtype_bytes        # bytes per spatial column, double-buffered
    max_tile = max(128, vmem_budget // per_col)
    max_tile -= max_tile % 128
    tile = min(hw, max_tile)
    while hw % tile != 0:
        tile -= 128

    def _shrink(t):
        t -= 128
        while t > 128 and hw % t != 0:
            t -= 128
        return t

    # Keep >= 8 grid steps so DMA/compute overlap and both v7x TCs have work,
    # but never shrink below a lane-dense 512-wide tile.
    while tile > 512 and n_batch * (hw // tile) < 8:
        tile = _shrink(tile)
    return tile


# ---------------------------------------------------------------------------
# Wrapper: AbstractDenoiser.forward semantics
# ---------------------------------------------------------------------------
class PallasDenoiser:
    """JAX/Pallas realization of AbstractDenoiser with a 1x1-conv _inner_forward
    and MSE loss_function."""

    def __init__(self, channels: int, key):
        kw, kb = jax.random.split(key)
        bound = 1.0 / (channels ** 0.5)
        # Conv2d(C, C, kernel_size=1) weight/bias, squeezed to (C, C) and (C,).
        self.weight = jax.random.uniform(
            kw, (channels, channels), jnp.float32, -bound, bound)
        self.bias = jax.random.uniform(kb, (channels,), jnp.float32, -bound, bound)
        self.training = True

    def __call__(self, x, target=None):
        n, c, h, w = x.shape
        hw = h * w
        pad = (-hw) % 128                # pad spatial axis up to a multiple of 128
        hw_p = hw + pad

        x_planes = x.reshape(n, c, hw)   # pure reshape: NCHW stays contiguous
        if pad:
            x_planes = jnp.pad(x_planes, ((0, 0), (0, 0), (0, pad)))

        w_mat = self.weight              # (C, C), used directly as W @ x
        b_col = self.bias.reshape(c, 1)  # lane-broadcast bias

        compute_loss = self.training or target is not None
        n_streams = 3 if compute_loss else 2             # (x, [target], pre)
        vmem_limit = _vmem_limit_bytes()
        resident = (w_mat.size + b_col.size) * 4
        stream_budget = vmem_limit - resident - 2 * 1024 * 1024   # headroom
        tile_s = _pick_spatial_tile(hw_p, c,
                                    dtype_bytes=x.dtype.itemsize,
                                    n_streams=n_streams,
                                    vmem_budget=stream_budget,
                                    n_batch=n)
        num_tiles = hw_p // tile_s
        grid = (n, num_tiles)

        x_spec = pl.BlockSpec((None, c, tile_s), lambda i, j: (i, 0, j))
        w_spec = pl.BlockSpec((c, c), lambda i, j: (0, 0))        # resident across grid
        b_spec = pl.BlockSpec((c, 1), lambda i, j: (0, 0))        # resident across grid
        o_spec = pl.BlockSpec((None, c, tile_s), lambda i, j: (i, 0, j))

        cparams = pltpu.CompilerParams(
            dimension_semantics=("parallel", "parallel"),
            vmem_limit_bytes=vmem_limit)

        if compute_loss:
            assert target is not None, "model in train mode, the target can't be None!"
            t_planes = target.reshape(n, c, hw)
            if pad:
                # pre of a zero-padded column is exactly the bias, so padding the target
                # with the bias makes padded columns contribute exactly zero loss.
                t_pad = jnp.broadcast_to(self.bias.reshape(1, c, 1),
                                         (n, c, pad)).astype(target.dtype)
                t_planes = jnp.concatenate([t_planes, t_pad], axis=-1)

            part_spec = pl.BlockSpec((None, None, 8, 128), lambda i, j: (i, j, 0, 0))

            pre_planes, parts = pl.pallas_call(
                _denoise_loss_kernel,
                grid=grid,
                out_shape=(
                    jax.ShapeDtypeStruct((n, c, hw_p), x.dtype),
                    jax.ShapeDtypeStruct((n, num_tiles, 8, 128), jnp.float32),
                ),
                in_specs=[x_spec, w_spec, b_spec, x_spec],
                out_specs=(o_spec, part_spec),
                compiler_params=cparams,
            )(x_planes, w_mat, b_col, t_planes)

            pre = pre_planes[:, :, :hw].reshape(n, c, h, w)
            # per-tile partials summed (pairwise by XLA) outside the kernel; scale hoisted out.
            loss = jnp.sum(parts[:, :, 0, 0]) / jnp.float32(n * c * hw)
            return pre, loss
        else:
            pre_planes = pl.pallas_call(
                _denoise_kernel,
                grid=grid,
                out_shape=jax.ShapeDtypeStruct((n, c, hw_p), x.dtype),
                in_specs=[x_spec, w_spec, b_spec],
                out_specs=o_spec,
                compiler_params=cparams,
            )(x_planes, w_mat, b_col)

            pre = pre_planes[:, :, :hw].reshape(n, c, h, w)
            return pre, None


# ---------------------------------------------------------------------------
# Main
# ---------------------------------------------------------------------------
if __name__ == "__main__":
    key = jax.random.PRNGKey(0)
    k_model, k_x, k_t = jax.random.split(key, 3)

    N, C, H, W = 2, 4, 16, 16
    x = jax.random.normal(k_x, (N, C, H, W), jnp.float32)
    target = jax.random.normal(k_t, (N, C, H, W), jnp.float32)

    model = PallasDenoiser(channels=C, key=k_model)

    # Training-mode forward: returns (pre, loss)
    pre, loss = model(x, target)
    jax.block_until_ready((pre, loss))

    # Pure-JAX reference check (conv1x1 as W @ plane + b, MSE loss)
    ref_planes = jnp.einsum("oi,nis->nos", model.weight, x.reshape(N, C, H * W))
    ref_planes = ref_planes + model.bias[None, :, None]
    ref_pre = ref_planes.reshape(N, C, H, W)
    ref_loss = jnp.mean((ref_pre - target) ** 2)

    assert jnp.allclose(pre, ref_pre, atol=1e-5, rtol=1e-5), "pre mismatch"
    assert jnp.allclose(loss, ref_loss, atol=1e-5, rtol=1e-5), "loss mismatch"

    # Eval-mode forward without target: loss must be None
    model.training = False
    pre_eval, loss_eval = model(x)
    jax.block_until_ready(pre_eval)
    assert loss_eval is None
    assert jnp.allclose(pre_eval, ref_pre, atol=1e-5, rtol=1e-5)

    print("KERNEL_OK")
</pallas_src>

<mosaic_0001>
module attributes {stable_mosaic.version = 11 : i64} {
  func.func @_denoise_loss_kernel(%arg0: i32, %arg1: i32, %arg2: memref<1x4x256xf32, #tpu.memory_space<vmem>>, %arg3: memref<4x4xf32, #tpu.memory_space<vmem>>, %arg4: memref<4x1xf32, #tpu.memory_space<vmem>>, %arg5: memref<1x4x256xf32, #tpu.memory_space<vmem>>, %arg6: memref<1x4x256xf32, #tpu.memory_space<vmem>>, %arg7: memref<1x1x8x128xf32, #tpu.memory_space<vmem>>) attributes {dimension_semantics = [#tpu.dimension_semantics<parallel>, #tpu.dimension_semantics<parallel>], iteration_bounds = array<i64: 2, 1>, scalar_prefetch = 0 : i64, scratch_operands = 0 : i64, tpu.core_type = #tpu.core_type<tc>, window_params = [{transform_indices = @transform_0, window_bounds = array<i64: 1, 4, 256>}, {pipeline_mode = #tpu.pipeline_mode<synchronous>, transform_indices = @transform_1, window_bounds = array<i64: 4, 4>}, {pipeline_mode = #tpu.pipeline_mode<synchronous>, transform_indices = @transform_2, window_bounds = array<i64: 4, 1>}, {transform_indices = @transform_3, window_bounds = array<i64: 1, 4, 256>}, {transform_indices = @transform_4, window_bounds = array<i64: 1, 4, 256>}, {transform_indices = @transform_5, window_bounds = array<i64: 1, 1, 8, 128>}]} {
    %c0 = arith.constant 0 : index
    %c0_0 = arith.constant 0 : index
    %0 = vector.load %arg3[%c0, %c0_0] : memref<4x4xf32, #tpu.memory_space<vmem>>, vector<4x4xf32>
    %c0_1 = arith.constant 0 : index
    %c0_2 = arith.constant 0 : index
    %c0_3 = arith.constant 0 : index
    %1 = vector.load %arg2[%c0_1, %c0_2, %c0_3] : memref<1x4x256xf32, #tpu.memory_space<vmem>>, vector<1x4x256xf32>
    %2 = vector.shape_cast %1 : vector<1x4x256xf32> to vector<4x256xf32>
    %cst = arith.constant dense<0.000000e+00> : vector<4x256xf32>
    %3 = tpu.matmul %0, %2, %cst {dimension_numbers = #tpu.dot_dimension_numbers<[1], [0], [0], [1], [0, 0, 1, 1], [], []>} : vector<4x4xf32>, vector<4x256xf32>, vector<4x256xf32> -> vector<4x256xf32>
    %c0_4 = arith.constant 0 : index
    %c0_5 = arith.constant 0 : index
    %4 = vector.load %arg4[%c0_4, %c0_5] : memref<4x1xf32, #tpu.memory_space<vmem>>, vector<4x1xf32>
    %5 = vector.broadcast %4 : vector<4x1xf32> to vector<4x256xf32>
    %6 = arith.addf %3, %5 : vector<4x256xf32>
    %c0_6 = arith.constant 0 : index
    %c0_7 = arith.constant 0 : index
    %c0_8 = arith.constant 0 : index
    %7 = vector.load %arg6[%c0_6, %c0_7, %c0_8] : memref<1x4x256xf32, #tpu.memory_space<vmem>>, vector<1x4x256xf32>
    %8 = vector.shape_cast %7 : vector<1x4x256xf32> to vector<4x256xf32>
    %9 = vector.shape_cast %6 : vector<4x256xf32> to vector<1x4x256xf32>
    tpu.vector_store %arg6[%c0_6, %c0_7, %c0_8], %9 {strides = array<i32>} : memref<1x4x256xf32, #tpu.memory_space<vmem>>, vector<1x4x256xf32>,
    %c0_9 = arith.constant 0 : index
    %c0_10 = arith.constant 0 : index
    %c0_11 = arith.constant 0 : index
    %10 = vector.load %arg5[%c0_9, %c0_10, %c0_11] : memref<1x4x256xf32, #tpu.memory_space<vmem>>, vector<1x4x256xf32>
    %11 = vector.shape_cast %10 : vector<1x4x256xf32> to vector<4x256xf32>
    %12 = arith.subf %6, %11 : vector<4x256xf32>
    %13 = arith.mulf %12, %12 : vector<4x256xf32>
    %14 = vector.shape_cast %13 : vector<4x256xf32> to vector<1x4x256xf32>
    %cst_12 = arith.constant dense<0.000000e+00> : vector<1xf32>
    %15 = vector.multi_reduction <add>, %14, %cst_12 [1, 2] : vector<1x4x256xf32> to vector<1xf32>
    %16 = vector.shape_cast %15 : vector<1xf32> to vector<1x1x1xf32>
    %17 = vector.extract %16[0, 0, 0] : f32 from vector<1x1x1xf32>
    %18 = vector.broadcast %17 : f32 to vector<8x128xf32>
    %c0_13 = arith.constant 0 : index
    %c0_14 = arith.constant 0 : index
    %c0_15 = arith.constant 0 : index
    %c0_16 = arith.constant 0 : index
    %19 = vector.load %arg7[%c0_13, %c0_14, %c0_15, %c0_16] : memref<1x1x8x128xf32, #tpu.memory_space<vmem>>, vector<1x1x8x128xf32>
    %20 = vector.shape_cast %19 : vector<1x1x8x128xf32> to vector<8x128xf32>
    %21 = vector.shape_cast %18 : vector<8x128xf32> to vector<1x1x8x128xf32>
    tpu.vector_store %arg7[%c0_13, %c0_14, %c0_15, %c0_16], %21 {strides = array<i32>} : memref<1x1x8x128xf32, #tpu.memory_space<vmem>>, vector<1x1x8x128xf32>,
    return
  }
  func.func @transform_0(%arg0: i32, %arg1: i32) -> (i32, i32, i32) {
    %c0_i32 = arith.constant 0 : i32
    %c0_i32_0 = arith.constant 0 : i32
    return %arg0, %c0_i32, %arg1 : i32, i32, i32
  }
  func.func @transform_1(%arg0: i32, %arg1: i32) -> (i32, i32) {
    %c0_i32 = arith.constant 0 : i32
    %c0_i32_0 = arith.constant 0 : i32
    %c0_i32_1 = arith.constant 0 : i32
    return %c0_i32, %c0_i32_0 : i32, i32
  }
  func.func @transform_2(%arg0: i32, %arg1: i32) -> (i32, i32) {
    %c0_i32 = arith.constant 0 : i32
    %c0_i32_0 = arith.constant 0 : i32
    %c0_i32_1 = arith.constant 0 : i32
    return %c0_i32, %c0_i32_0 : i32, i32
  }
  func.func @transform_3(%arg0: i32, %arg1: i32) -> (i32, i32, i32) {
    %c0_i32 = arith.constant 0 : i32
    %c0_i32_0 = arith.constant 0 : i32
    return %arg0, %c0_i32, %arg1 : i32, i32, i32
  }
  func.func @transform_4(%arg0: i32, %arg1: i32) -> (i32, i32, i32) {
    %c0_i32 = arith.constant 0 : i32
    %c0_i32_0 = arith.constant 0 : i32
    return %arg0, %c0_i32, %arg1 : i32, i32, i32
  }
  func.func @transform_5(%arg0: i32, %arg1: i32) -> (i32, i32, i32, i32) {
    %c0_i32 = arith.constant 0 : i32
    %c0_i32_0 = arith.constant 0 : i32
    %c0_i32_1 = arith.constant 0 : i32
    return %arg0, %arg1, %c0_i32, %c0_i32_0 : i32, i32, i32, i32
  }
}

</mosaic_0001>

<llo_original>
// kernel: tpu_custom_call.1
$region0: #{tpu_custom_call.1}
  #allocation0 [shape = 'u32[]', space=smem, size = 0x4, offset = 0x4, fixed_abs, tag = 'smem constant byte address 0x4 - core index']
  #allocation1 [shape = 'u32[144,128]{1,0:T(1,128)}', space=vmem, size = 0x12000, scoped, tag = 'internal scratch']
  %s0 = inlined_call_operand.hbm [shape: f32[2,4,256], index: 0, kind: input, shape index: {}]
  %s1 = inlined_call_operand.vmem [shape: f32[4,4], index: 1, kind: input, shape index: {}]
  %s2 = inlined_call_operand.vmem [shape: f32[4,1], index: 2, kind: input, shape index: {}]
  %s3 = inlined_call_operand.hbm [shape: f32[2,4,256], index: 3, kind: input, shape index: {}]
  %s4 = inlined_call_operand.hbm [shape: f32[2,4,256], index: 4, kind: output, shape index: {0}]
  %s5 = inlined_call_operand.hbm [shape: f32[2,1,8,128], index: 5, kind: output, shape index: {1}]
  %6 = xla_tuple %s4, %s5
  %s7 = sld [smem:[#allocation0]]
  $region65: #{tpu_custom_call.1} parent=0
    _
  %s9 = ssub.s32 1, %s7
  %s10 = scalar_select 0, %s9, %s7
  $region1: #{tpu_custom_call.1} parent=0
    #allocation2 [shape = 'u8[8192]{0}', space=vmem, size = 0x2000, scoped, tag = 'input window, operand 0']
    #allocation3 [shape = 's32[2]{0}', space=sflag, size = 0x8, scoped, tag = 'scoped memory for tpu_custom_call.1']
    #allocation4 [shape = 's32[2]{0}', space=sflag, size = 0x8, scoped, tag = 'scoped memory for tpu_custom_call.1']
    #allocation5 [shape = 'u8[8192]{0}', space=vmem, size = 0x2000, scoped, tag = 'input window, operand 3']
    #allocation6 [shape = 's32[2]{0}', space=sflag, size = 0x8, scoped, tag = 'scoped memory for tpu_custom_call.1']
    #allocation7 [shape = 'u8[8192]{0}', space=vmem, size = 0x2000, scoped, tag = 'output window, operand 0']
    #allocation8 [shape = 'u8[8192]{0}', space=vmem, size = 0x2000, scoped, tag = 'output window, operand 1']
    #allocation9 [shape = 's32[2]{0}', space=sflag, size = 0x8, scoped, tag = 'scoped memory for tpu_custom_call.1']
    %11 = vsyncpa [#allocation3], 0
    %s12 = scalar_lea.sflag [#allocation3], 1
    %13 = vsyncpa %s12, 0
    %14 = vsyncpa [#allocation6], 0
    %s15 = scalar_lea.sflag [#allocation6], 1
    %16 = vsyncpa %s15, 0
    %17 = vsyncpa [#allocation4], 0
    %s18 = scalar_lea.sflag [#allocation4], 1
    %19 = vsyncpa %s18, 0
    %20 = vsyncpa [#allocation9], 0
    %s21 = scalar_lea.sflag [#allocation9], 1
    %22 = vsyncpa %s21, 0
    loop: start=0, step=1, limit=4
    $region2: #{tpu_custom_call.1} parent=1 // loop_pre_header
      _
    $region3: #{tpu_custom_call.1} parent=1 // loop_header
      %s24 = sphi 0, %s28
      %p25 = scmp.ge.s32.totalorder %s24, 4
      %s31 = sphi 0, %s43
      %s32 = sphi 0, %s39
      %s33 = sphi 0, %s31
      %s34 = sphi 0, %s32
      %s35 = sphi 0, %s33
      %s36 = sphi 0, %s34
      %s48 = sphi 0, %s50
      %s51 = sphi 0, %s48
      %s52 = sphi 0, %s51
      %s68 = sphi 0, %s52
      %s72 = sphi 0, %s72
      %s74 = sphi 0, %s72
      %s75 = sphi 0, %s74
      %s89 = sphi 0, %s75
      %s93 = sphi 0, %s93
      %s95 = sphi 0, %s93
      %s96 = sphi 0, %s95
      %s110 = sphi 0, %s96
      %s118 = sphi 0, %s120
      %s121 = sphi 0, %s118
      %s122 = sphi 0, %s121
      %s138 = sphi 0, %s122
      %s146 = sphi 0, %s148
      %s149 = sphi 0, %s146
      %s150 = sphi 0, %s149
      %s166 = sphi 0, %s150
      %s174 = sphi 0, %s176
      %s177 = sphi 0, %s174
      %s178 = sphi 0, %s177
      %s194 = sphi 0, %s178
    $region4: #{tpu_custom_call.1} parent=1 // loop_header_branch
      %27 = sbr.rel (%p25) target = $region8
    $region5: #{tpu_custom_call.1} parent=1 // loop_body
      %s29 = ssub.s32 %s24, 1
      %s30 = ssub.s32 %s24, 2
      %s37 = sadd.s32 1, %s32
      %p38 = scmp.ge.s32.totalorder %s37, 1
      %s39 = scalar_select %p38, 0, %s37
      %s40 = sadd.s32 1, %s31
      %s41 = scalar_select %p38, %s40, %s31
      %p42 = scmp.ge.s32.totalorder %s41, 2
      %s43 = scalar_select %p42, 0, %s41
      %s44 = ssub.s32 %s31, %s43
      %s45 = ssub.s32 %s32, %s39
      %s46 = sor.u32 %s44, %s45
      %p47 = scmp.eq.s32.totalorder %s46, 0
      %s49 = sadd.s32 %s48, 1
      %s50 = scalar_select %p47, %s48, %s49
      %p53 = pneg %p47
      %p54 = scmp.eq.s32.totalorder %s24, 1
      %p55 = por %p53, %p54
      %p56 = scmp.ne.s32.totalorder %s48, %s51
      %p57 = scmp.eq.s32.totalorder %s24, 0
      %p58 = por %p56, %p57
      %p59 = scmp.ne.s32.totalorder %s48, %s51
      %p60 = scmp.eq.s32.totalorder %s29, 1
      %p61 = por %p59, %p60
      %p62 = scmp.ne.s32.totalorder %s51, %s52
      %p63 = scmp.eq.s32.totalorder %s29, 0
      %p64 = por %p62, %p63
      %p65 = scmp.ne.s32.totalorder %s51, %s52
      %p66 = scmp.eq.s32.totalorder %s30, 1
      %p67 = por %p65, %p66
      %p69 = scmp.ne.s32.totalorder %s52, %s68
      %p70 = scmp.eq.s32.totalorder %s30, 0
      %p71 = por %p69, %p70
      %s73 = sadd.s32 %s72, 1
      %p76 = scmp.eq.s32.totalorder %s24, 1
      %p77 = scmp.ne.s32.totalorder %s72, %s74
      %p78 = scmp.eq.s32.totalorder %s24, 0
      %p79 = por %p77, %p78
      %p80 = scmp.ne.s32.totalorder %s72, %s74
      %p81 = scmp.eq.s32.totalorder %s29, 1
      %p82 = por %p80, %p81
      %p83 = scmp.ne.s32.totalorder %s74, %s75
      %p84 = scmp.eq.s32.totalorder %s29, 0
      %p85 = por %p83, %p84
      %p86 = scmp.ne.s32.totalorder %s74, %s75
      %p87 = scmp.eq.s32.totalorder %s30, 1
      %p88 = por %p86, %p87
      %p90 = scmp.ne.s32.totalorder %s75, %s89
      %p91 = scmp.eq.s32.totalorder %s30, 0
      %p92 = por %p90, %p91
      %s94 = sadd.s32 %s93, 1
      %p97 = scmp.eq.s32.totalorder %s24, 1
      %p98 = scmp.ne.s32.totalorder %s93, %s95
      %p99 = scmp.eq.s32.totalorder %s24, 0
      %p100 = por %p98, %p99
      %p101 = scmp.ne.s32.totalorder %s93, %s95
      %p102 = scmp.eq.s32.totalorder %s29, 1
      %p103 = por %p101, %p102
      %p104 = scmp.ne.s32.totalorder %s95, %s96
      %p105 = scmp.eq.s32.totalorder %s29, 0
      %p106 = por %p104, %p105
      %p107 = scmp.ne.s32.totalorder %s95, %s96
      %p108 = scmp.eq.s32.totalorder %s30, 1
      %p109 = por %p107, %p108
      %p111 = scmp.ne.s32.totalorder %s96, %s110
      %p112 = scmp.eq.s32.totalorder %s30, 0
      %p113 = por %p111, %p112
      %s114 = ssub.s32 %s31, %s43
      %s115 = ssub.s32 %s32, %s39
      %s116 = sor.u32 %s114, %s115
      %p117 = scmp.eq.s32.totalorder %s116, 0
      %s119 = sadd.s32 %s118, 1
      %s120 = scalar_select %p117, %s118, %s119
      %p123 = pneg %p117
      %p124 = scmp.eq.s32.totalorder %s24, 1
      %p125 = por %p123, %p124
      %p126 = scmp.ne.s32.totalorder %s118, %s121
      %p127 = scmp.eq.s32.totalorder %s24, 0
      %p128 = por %p126, %p127
      %p129 = scmp.ne.s32.totalorder %s118, %s121
      %p130 = scmp.eq.s32.totalorder %s29, 1
      %p131 = por %p129, %p130
      %p132 = scmp.ne.s32.totalorder %s121, %s122
      %p133 = scmp.eq.s32.totalorder %s29, 0
      %p134 = por %p132, %p133
      %p135 = scmp.ne.s32.totalorder %s121, %s122
      %p136 = scmp.eq.s32.totalorder %s30, 1
      %p137 = por %p135, %p136
      %p139 = scmp.ne.s32.totalorder %s122, %s138
      %p140 = scmp.eq.s32.totalorder %s30, 0
      %p141 = por %p139, %p140
      %s142 = ssub.s32 %s31, %s43
      %s143 = ssub.s32 %s32, %s39
      %s144 = sor.u32 %s142, %s143
      %p145 = scmp.eq.s32.totalorder %s144, 0
      %s147 = sadd.s32 %s146, 1
      %s148 = scalar_select %p145, %s146, %s147
      %p151 = pneg %p145
      %p152 = scmp.eq.s32.totalorder %s24, 1
      %p153 = por %p151, %p152
      %p154 = scmp.ne.s32.totalorder %s146, %s149
      %p155 = scmp.eq.s32.totalorder %s24, 0
      %p156 = por %p154, %p155
      %p157 = scmp.ne.s32.totalorder %s146, %s149
      %p158 = scmp.eq.s32.totalorder %s29, 1
      %p159 = por %p157, %p158
      %p160 = scmp.ne.s32.totalorder %s149, %s150
      %p161 = scmp.eq.s32.totalorder %s29, 0
      %p162 = por %p160, %p161
      %p163 = scmp.ne.s32.totalorder %s149, %s150
      %p164 = scmp.eq.s32.totalorder %s30, 1
      %p165 = por %p163, %p164
      %p167 = scmp.ne.s32.totalorder %s150, %s166
      %p168 = scmp.eq.s32.totalorder %s30, 0
      %p169 = por %p167, %p168
      %s170 = ssub.s32 %s31, %s43
      %s171 = ssub.s32 %s32, %s39
      %s172 = sor.u32 %s170, %s171
      %p173 = scmp.eq.s32.totalorder %s172, 0
      %s175 = sadd.s32 %s174, 1
      %s176 = scalar_select %p173, %s174, %s175
      %p179 = pneg %p173
      %p180 = scmp.eq.s32.totalorder %s24, 1
      %p181 = por %p179, %p180
      %p182 = scmp.ne.s32.totalorder %s174, %s177
      %p183 = scmp.eq.s32.totalorder %s24, 0
      %p184 = por %p182, %p183
      %p185 = scmp.ne.s32.totalorder %s174, %s177
      %p186 = scmp.eq.s32.totalorder %s29, 1
      %p187 = por %p185, %p186
      %p188 = scmp.ne.s32.totalorder %s177, %s178
      %p189 = scmp.eq.s32.totalorder %s29, 0
      %p190 = por %p188, %p189
      %p191 = scmp.ne.s32.totalorder %s177, %s178
      %p192 = scmp.eq.s32.totalorder %s30, 1
      %p193 = por %p191, %p192
      %p195 = scmp.ne.s32.totalorder %s178, %s194
      %p196 = scmp.eq.s32.totalorder %s30, 0
      %p197 = por %p195, %p196
      %p198 = scmp.le.s32.totalorder 1, %s24
      %p199 = scmp.lt.s32.totalorder %s24, 3
      %p200 = pnand %p198, %p199
      %p201 = pneg %p200
      // Predicated region
      $region9: #{tpu_custom_call.1} parent=5 // pred_check
        _
      $region10: #{tpu_custom_call.1} parent=5 // pred_check_branch
        %203 = sbr.rel (%p200) target = $region12
      $region11: #{tpu_custom_call.1} parent=5 // pred_region
        %s204 = ssub.s32 %s24, 1
        // Predicated region
        $region13: #{tpu_custom_call.1} parent=11 // pred_check
          %p205 = pneg %p85
        $region14: #{tpu_custom_call.1} parent=11 // pred_check_branch
          %207 = sbr.rel (%p205) target = $region16
        $region15: #{tpu_custom_call.1} parent=11 // pred_region
          _
        $region16: #{tpu_custom_call.1} parent=11 // pred_fallthru
          _
        // Predicated region
        $region17: #{tpu_custom_call.1} parent=11 // pred_check
          %p208 = pneg %p106
        $region18: #{tpu_custom_call.1} parent=11 // pred_check_branch
          %210 = sbr.rel (%p208) target = $region20
        $region19: #{tpu_custom_call.1} parent=11 // pred_region
          _
        $region20: #{tpu_custom_call.1} parent=11 // pred_fallthru
          _
      $region12: #{tpu_custom_call.1} parent=5 // pred_fallthru
        _
      %p211 = scmp.lt.s32.totalorder %s24, 2
      // Predicated region
      $region21: #{tpu_custom_call.1} parent=5 // pred_check
        %p212 = pneg %p211
      $region22: #{tpu_custom_call.1} parent=5 // pred_check_branch
        %214 = sbr.rel (%p212) target = $region24
      $region23: #{tpu_custom_call.1} parent=5 // pred_region
        // Predicated region
        $region25: #{tpu_custom_call.1} parent=23 // pred_check
          %p215 = pneg %p58
        $region26: #{tpu_custom_call.1} parent=23 // pred_check_branch
          %217 = sbr.rel (%p215) target = $region28
        $region27: #{tpu_custom_call.1} parent=23 // pred_region
          %s218 = sand.u32 %s48, 1
          %s219 = scalar_lea.sflag [#allocation3], %s218
          %s220 = sand.u32 %s48, 1
          %s221 = smul.addr %s220, 8
          %s222 = scalar_lea.vmem [#allocation2], %s221
          %s223 = smul.u32 2, %s32
          %s225 = ssub.s32 128, 128
          %226 = vsyncadd %s219, %s225
          %s227 = smul.addr %s31, 2
          %s228 = sadd.s32 %s223, %s227
          %s229 = smul.addr %s228, 64
          %s230 = scalar_lea.hbm %s0, %s229
          %s232 = sshll.u32 %s222, 4
          %s233 = int_to_ptr.vmem [resolvable:$true] %s232
          %235 = dma.hbm_to_vmem [thread:$0]  %s230, 128, %s233, %s219
        $region28: #{tpu_custom_call.1} parent=23 // pred_fallthru
          _
        // Predicated region
        $region29: #{tpu_custom_call.1} parent=23 // pred_check
          %p236 = pneg %p128
        $region30: #{tpu_custom_call.1} parent=23 // pred_check_branch
          %238 = sbr.rel (%p236) target = $region32
        $region31: #{tpu_custom_call.1} parent=23 // pred_region
          %s239 = sand.u32 %s118, 1
          %s240 = scalar_lea.sflag [#allocation6], %s239
          %s241 = sand.u32 %s118, 1
          %s242 = smul.addr %s241, 8
          %s243 = scalar_lea.vmem [#allocation5], %s242
          %s244 = smul.u32 2, %s32
          %s246 = ssub.s32 128, 128
          %247 = vsyncadd %s240, %s246
          %s248 = smul.addr %s31, 2
          %s249 = sadd.s32 %s244, %s248
          %s250 = smul.addr %s249, 64
          %s251 = scalar_lea.hbm %s3, %s250
          %s253 = sshll.u32 %s243, 4
          %s254 = int_to_ptr.vmem [resolvable:$true] %s253
          %256 = dma.hbm_to_vmem [thread:$0]  %s251, 128, %s254, %s240
        $region32: #{tpu_custom_call.1} parent=23 // pred_fallthru
          _
      $region24: #{tpu_custom_call.1} parent=5 // pred_fallthru
        _
      %p257 = scmp.le.s32.totalorder 1, %s24
      %p258 = scmp.lt.s32.totalorder %s24, 3
      %p259 = pnand %p257, %p258
      %p260 = pneg %p259
      // Predicated region
      $region33: #{tpu_custom_call.1} parent=5 // pred_check
        _
      $region34: #{tpu_custom_call.1} parent=5 // pred_check_branch
        %262 = sbr.rel (%p259) target = $region36
      $region35: #{tpu_custom_call.1} parent=5 // pred_region
        %s263 = ssub.s32 %s24, 1
        %s264 = sand.u32 %s51, 1
        %s265 = scalar_lea.sflag [#allocation3], %s264
        %s266 = sand.u32 %s51, 1
        %s267 = smul.addr %s266, 8
        %s268 = scalar_lea.vmem [#allocation2], %s267
        // Predicated region
        $region37: #{tpu_custom_call.1} parent=35 // pred_check
          %p269 = pneg %p64
        $region38: #{tpu_custom_call.1} parent=35 // pred_check_branch
          %271 = sbr.rel (%p269) target = $region40
        $region39: #{tpu_custom_call.1} parent=35 // pred_region
          %272 = dma.done %s265, 128
        $region40: #{tpu_custom_call.1} parent=35 // pred_fallthru
          _
        %s273 = sand.u32 %s121, 1
        %s274 = scalar_lea.sflag [#allocation6], %s273
        %s275 = sand.u32 %s121, 1
        %s276 = smul.addr %s275, 8
        %s277 = scalar_lea.vmem [#allocation5], %s276
        // Predicated region
        $region41: #{tpu_custom_call.1} parent=35 // pred_check
          %p278 = pneg %p134
        $region42: #{tpu_custom_call.1} parent=35 // pred_check_branch
          %280 = sbr.rel (%p278) target = $region44
        $region43: #{tpu_custom_call.1} parent=35 // pred_region
          %281 = dma.done %s274, 128
        $region44: #{tpu_custom_call.1} parent=35 // pred_fallthru
          _
        %s282 = sand.u32 %s51, 1
        %s283 = scalar_lea.sflag [#allocation3], %s282
        %s284 = sand.u32 %s51, 1
        %s285 = smul.addr %s284, 8
        %s286 = scalar_lea.vmem [#allocation2], %s285
        %p287 = pneg %p64
        %p288 = pneg %p61
        %p289 = pneg %p85
        %p290 = pneg %p82
        %p291 = pneg %p106
        %p292 = pneg %p103
        %s293 = sand.u32 %s121, 1
        %s294 = scalar_lea.sflag [#allocation6], %s293
        %s295 = sand.u32 %s121, 1
        %s296 = smul.addr %s295, 8
        %s297 = scalar_lea.vmem [#allocation5], %s296
        %p298 = pneg %p134
        %p299 = pneg %p131
        %p300 = pneg %p162
        %p301 = pneg %p159
        %s302 = sand.u32 %s149, 1
        %s303 = scalar_lea.sflag [#allocation4], %s302
        %s304 = sand.u32 %s149, 1
        %s305 = smul.addr %s304, 8
        %s306 = scalar_lea.vmem [#allocation7], %s305
        %p307 = pneg %p190
        %p308 = pneg %p187
        %s309 = sand.u32 %s177, 1
        %s310 = scalar_lea.sflag [#allocation9], %s309
        %s311 = sand.u32 %s177, 1
        %s312 = smul.addr %s311, 8
        %s313 = scalar_lea.vmem [#allocation8], %s312
        %s314 = smul.u32 2, %s34
        %s315 = smul.u32 2, %s34
        %s316 = smul.u32 2, %s34
        %v317 = vld [vmem:[%s1] sm:$0xf]
        %v318 = vld [vmem:[%s268] sm:$0xff]
        %v319 = vld [vmem:[%s2] sm:$0xf]
        %321 = vset.pattern.permute.xlu0 0
        %322 = vperm.xlu0 %321, %v319
        %v323 = vpop.permute.xlu0 %322
        %v326 = vcombine.high %v318, %v318
        %vm327 = vcmask 31744
        %v329 = vsel %vm327, %v317, 0
        %vm331 = vcmask 1043456
        %v332 = vsel %vm331, %v318, 0
        %v334 = vsel %vm331, %v326, 0
        %336 = vmatprep.subr.mxu0 0.0
        %337 = vmatpush1.msra.mxu0 0.0
        %338 = vmatprep.subr.mxu0 0.0
        %339 = vmatpush1.msra.mxu0 0.0
        %340 = vmatprep.subr.mxu0 0.0
        %341 = vmatpush1.msra.mxu0 0.0
        %342 = vmatprep.subr.mxu0 0.0
        %343 = vmatpush1.msra.mxu0 0.0
        %344 = vmatprep.subr.mxu0 0.0
        %345 = vmatpush1.msra.mxu0 0.0
        %346 = vmatprep.subr.mxu0 0.0
        %347 = vmatpush1.msra.mxu0 0.0
        %348 = vmatprep.subr.mxu0 0.0
        %349 = vmatpush1.msra.mxu0 0.0
        %350 = vmatprep.subr.mxu0 0.0
        %351 = vmatpush1.msra.mxu0 0.0
        %352 = vmatprep.subr.mxu0 0.0
        %353 = vmatpush1.msra.mxu0 0.0
        %354 = vmatprep.subr.mxu0 0.0
        %355 = vmatpush1.msra.mxu0 0.0
        %356 = vmatprep.subr.mxu0 0.0
        %357 = vmatpush1.msra.mxu0 0.0
        %358 = vmatprep.subr.mxu0 0.0
        %359 = vmatpush1.msra.mxu0 0.0
        %360 = vmatprep.subr.mxu0 0.0
        %361 = vmatpush1.msra.mxu0 0.0
        %362 = vmatprep.subr.mxu0 0.0
        %363 = vmatpush1.msra.mxu0 0.0
        %364 = vmatprep.subr.mxu0 0.0
        %365 = vmatpush1.msra.mxu0 0.0
        %366 = vmatprep.subr.mxu0 %v334
        %367 = vmatpush1.msra.mxu0 %v332
        %368 = vmatprep.subr.mxu0 0.0
        %369 = vmatpush2.msra.mxu0 0.0
        %370 = vmatprep.subr.mxu0 0.0
        %371 = vmatpush2.msra.mxu0 0.0
        %372 = vmatprep.subr.mxu0 0.0
        %373 = vmatpush2.msra.mxu0 0.0
        %374 = vmatprep.subr.mxu0 0.0
        %375 = vmatpush2.msra.mxu0 0.0
        %376 = vmatprep.subr.mxu0 0.0
        %377 = vmatpush2.msra.mxu0 0.0
        %378 = vmatprep.subr.mxu0 0.0
        %379 = vmatpush2.msra.mxu0 0.0
        %380 = vmatprep.subr.mxu0 0.0
        %381 = vmatpush2.msra.mxu0 0.0
        %382 = vmatprep.subr.mxu0 0.0
        %383 = vmatpush2.msra.mxu0 0.0
        %384 = vmatprep.subr.mxu0 0.0
        %385 = vmatpush2.msra.mxu0 0.0
        %386 = vmatprep.subr.mxu0 0.0
        %387 = vmatpush2.msra.mxu0 0.0
        %388 = vmatprep.subr.mxu0 0.0
        %389 = vmatpush2.msra.mxu0 0.0
        %390 = vmatprep.subr.mxu0 0.0
        %391 = vmatpush2.msra.mxu0 0.0
        %392 = vmatprep.subr.mxu0 0.0
        %393 = vmatpush2.msra.mxu0 0.0
        %394 = vmatprep.subr.mxu0 0.0
        %395 = vmatpush2.msra.mxu0 0.0
        %396 = vmatprep.subr.mxu0 0.0
        %397 = vmatpush2.msra.mxu0 0.0
        %398 = vmatprep.subr.mxu0 0.0
        %399 = vmatpush2.msra.mxu0 0.0
        %400 = vmatprep.mubr.f32.mxu0 0.0
        %401 = vmatmul.mubr.f32.gmra.mxu0 %v329
        %v402 = vpop.f32.mrf.mxu0
        %v403 = vadd.f32 %v323, %v402
        %v404 = vpop.f32.mrf.mxu0
        %v405 = vadd.f32 %v323, %v404
        %406 = vdwg.mxu0
        %v409 = vcombine.low %v403, %v405
        %411 = vst [vmem:[%s306] sm:$0xff] %v409
        %v412 = vld [vmem:[%s277] sm:$0xff]
        %v414 = vcombine.high %v412, %v412
        %v416 = vsub.f32 %v403, %v412
        %v417 = vsub.f32 %v405, %v414
        %v418 = vmul.f32 %v416, %v416
        %v419 = vmul.f32 %v417, %v417
        %v420 = vsel %vm331, %v418, 0.0
        %v421 = vsel %vm331, %v419, 0.0
        %v422 = vadd.f32 %v420, %v421
        %423 = vadd.xlane.f32.xlu0 %v422
        %v424 = vpop.xlane.xlu0 %423
        %v425 = vrot.slane %v424, 4
        %v426 = vadd.f32 %v424, %v425
        %v427 = vrot.slane %v426, 2
        %v428 = vadd.f32 %v426, %v427
        %v429 = vrot.slane %v428, 1
        %v430 = vadd.f32 %v428, %v429
        %s431 = vtos %v430
        %v432 = vstv %s431
        %433 = vst [vmem:[%s313] sm:$0xff] %v432
        %s434 = sand.u32 %s149, 1
        %s435 = scalar_lea.sflag [#allocation4], %s434
        %s436 = sand.u32 %s149, 1
        %s437 = smul.addr %s436, 8
        %s438 = scalar_lea.vmem [#allocation7], %s437
        %s439 = sand.u32 %s177, 1
        %s440 = scalar_lea.sflag [#allocation9], %s439
        %s441 = sand.u32 %s177, 1
        %s442 = smul.addr %s441, 8
        %s443 = scalar_lea.vmem [#allocation8], %s442
        // Predicated region
        $region45: #{tpu_custom_call.1} parent=35 // pred_check
          %p444 = pneg %p159
        $region46: #{tpu_custom_call.1} parent=35 // pred_check_branch
          %446 = sbr.rel (%p444) target = $region48
        $region47: #{tpu_custom_call.1} parent=35 // pred_region
          %s447 = smul.u32 2, %s34
          %s449 = ssub.s32 128, 128
          %450 = vsyncadd %s435, %s449
          %s451 = smul.addr %s33, 2
          %s452 = sadd.s32 %s447, %s451
          %s453 = smul.addr %s452, 64
          %s454 = scalar_lea.hbm %s4, %s453
          %s456 = sshll.u32 %s438, 4
          %s457 = int_to_ptr.vmem [resolvable:$true] %s456
          %459 = dma.vmem_to_hbm [thread:$0]  %s457, 128, %s454, %s435
        $region48: #{tpu_custom_call.1} parent=35 // pred_fallthru
          _
        // Predicated region
        $region49: #{tpu_custom_call.1} parent=35 // pred_check
          %p460 = pneg %p187
        $region50: #{tpu_custom_call.1} parent=35 // pred_check_branch
          %462 = sbr.rel (%p460) target = $region52
        $region51: #{tpu_custom_call.1} parent=35 // pred_region
          %s464 = ssub.s32 128, 128
          %465 = vsyncadd %s440, %s464
          %s466 = sadd.s32 %s34, %s33
          %s467 = smul.addr %s466, 128
          %s468 = scalar_lea.hbm %s5, %s467
          %s470 = sshll.u32 %s443, 4
          %s471 = int_to_ptr.vmem [resolvable:$true] %s470
          %473 = dma.vmem_to_hbm [thread:$0]  %s471, 128, %s468, %s440
        $region52: #{tpu_custom_call.1} parent=35 // pred_fallthru
          _
      $region36: #{tpu_custom_call.1} parent=5 // pred_fallthru
        _
      %p474 = scmp.le.s32.totalorder 2, %s24
      // Predicated region
      $region53: #{tpu_custom_call.1} parent=5 // pred_check
        %p475 = pneg %p474
      $region54: #{tpu_custom_call.1} parent=5 // pred_check_branch
        %477 = sbr.rel (%p475) target = $region56
      $region55: #{tpu_custom_call.1} parent=5 // pred_region
        %s478 = ssub.s32 %s24, 2
        // Predicated region
        $region57: #{tpu_custom_call.1} parent=55 // pred_check
          %p479 = pneg %p165
        $region58: #{tpu_custom_call.1} parent=55 // pred_check_branch
          %481 = sbr.rel (%p479) target = $region60
        $region59: #{tpu_custom_call.1} parent=55 // pred_region
          %s482 = sand.u32 %s150, 1
          %s483 = scalar_lea.sflag [#allocation4], %s482
          %s484 = sand.u32 %s150, 1
          %s485 = smul.addr %s484, 8
          %s486 = scalar_lea.vmem [#allocation7], %s485
          %487 = dma.done %s483, 128
        $region60: #{tpu_custom_call.1} parent=55 // pred_fallthru
          _
        // Predicated region
        $region61: #{tpu_custom_call.1} parent=55 // pred_check
          %p488 = pneg %p193
        $region62: #{tpu_custom_call.1} parent=55 // pred_check_branch
          %490 = sbr.rel (%p488) target = $region64
        $region63: #{tpu_custom_call.1} parent=55 // pred_region
          %s491 = sand.u32 %s178, 1
          %s492 = scalar_lea.sflag [#allocation9], %s491
          %s493 = sand.u32 %s178, 1
          %s494 = smul.addr %s493, 8
          %s495 = scalar_lea.vmem [#allocation8], %s494
          %496 = dma.done %s492, 128
        $region64: #{tpu_custom_call.1} parent=55 // pred_fallthru
          _
      $region56: #{tpu_custom_call.1} parent=5 // pred_fallthru
        _
    $region6: #{tpu_custom_call.1} parent=1 // loop_footer
      %s28 = sadd.s32 1, %s24
    $region7: #{tpu_custom_call.1} parent=1 // loop_footer_branch
      %23 = sbr.rel target = $region3
    $region8: #{tpu_custom_call.1} parent=1 // loop_exit
      _
    %497 = vsyncpa [#allocation3], 1
    %s498 = scalar_lea.sflag [#allocation3], 1
    %499 = vsyncpa %s498, 1
    %500 = vsyncpa [#allocation6], 1
    %s501 = scalar_lea.sflag [#allocation6], 1
    %502 = vsyncpa %s501, 1
    %503 = vsyncpa [#allocation4], 1
    %s504 = scalar_lea.sflag [#allocation4], 1
    %505 = vsyncpa %s504, 1
    %506 = vsyncpa [#allocation9], 1
    %s507 = scalar_lea.sflag [#allocation9], 1
    %508 = vsyncpa %s507, 1

</llo_original>
